<compile_context>
chip_gen: v7x
topology: tpu7x:2x2x1
jax: 0.10.0
libtpu: 0.0.40
codegen_flags: <defaults>
</compile_context>

<pallas_src>
import functools

import numpy as np
import jax
import jax.numpy as jnp
from jax.experimental import pallas as pl
from jax.experimental.pallas import tpu as pltpu

LN_EPS = 1e-5  # nn.LayerNorm default eps


def _round_up(v, m):
    return ((v + m - 1) // m) * m


# ----------------------------------------------------------------------------
# Pallas kernel
# ----------------------------------------------------------------------------
def _mlp_kernel(x_ref, w1_ref, b1_ref, g_ref, bt_ref, w2_ref, wo_ref, scal_ref,
                out_ref, acc_ref, *, d_real):
    """Fused fc1 + ReLU + LayerNorm + fc2-reduction + output projection.

    x_ref  : (tm, Dp)   row tile of the (padded) input
    w1_ref : (Dp, Dp)   fc1 weight, already transposed (y = x @ W1^T)
    b1_ref : (1, Dp)    fc1 bias
    g_ref  : (1, Dp)    LayerNorm gamma (zero in padded lanes)
    bt_ref : (1, Dp)    LayerNorm beta  (zero in padded lanes)
    w2_ref : (1, tm)    fc2 weight slice for this row tile (zero in padded rows)
    wo_ref : (1, Dp)    output-layer weight (zero in padded lanes)
    scal_ref: (2,) SMEM [fc2 bias, output bias]
    out_ref: (1, 1)     final scalar
    acc_ref: (1, Dp)    f32 accumulator for the fc2 pre-activation
    """
    i = pl.program_id(0)

    @pl.when(i == 0)
    def _():
        acc_ref[...] = jnp.zeros_like(acc_ref)

    # fc1 + ReLU on the MXU, f32 accumulation.
    h = jnp.dot(x_ref[...], w1_ref[...], preferred_element_type=jnp.float32)
    h = jnp.maximum(h + b1_ref[...], 0.0)                       # (tm, Dp)

    # LayerNorm over the real input_dim columns.  Padded columns of `h` are
    # exactly zero (zero-padded x / W1 / b1), so lane-axis sums over the padded
    # width equal the sums over the real columns; divide by the true D.
    inv_d = 1.0 / d_real
    mu = jnp.sum(h, axis=-1, keepdims=True) * inv_d
    ex2 = jnp.sum(h * h, axis=-1, keepdims=True) * inv_d
    var = jnp.maximum(ex2 - mu * mu, 0.0)
    hn = (h - mu) * jax.lax.rsqrt(var + LN_EPS) * g_ref[...] + bt_ref[...]

    # fc2 pre-activation: acc[0, d] += sum_s w2[s] * hidden1[s, d]
    # (== (hidden1.T @ W2^T).T accumulated over row tiles).
    acc_ref[...] += jnp.dot(w2_ref[...], hn, preferred_element_type=jnp.float32)

    @pl.when(i == pl.num_programs(0) - 1)
    def _():
        b2 = scal_ref[0]
        bo = scal_ref[1]
        h2 = jnp.maximum(acc_ref[...] + b2, 0.0)                # relu(fc2(...)) as (1, Dp)
        out = jnp.sum(h2 * wo_ref[...], axis=-1, keepdims=True) + bo
        out_ref[...] = out


# ----------------------------------------------------------------------------
# Wrapper: padding, BlockSpecs, pallas_call
# ----------------------------------------------------------------------------
def mlp2hidden_relu_forward(arrays, params, *, tm_max=256):
    """arrays: (stacked_dim, input_dim) -> (1, 1), matching the PyTorch module."""
    S, D = arrays.shape
    dp = _round_up(D, 128)                      # lane-dense feature axis
    if S <= tm_max:
        tm = _round_up(S, 8)                    # single row tile (sublane aligned)
        s_pad = tm
    else:
        tm = tm_max                             # multiple of 128: legal lane block for w2
        s_pad = _round_up(S, tm)
    grid = (s_pad // tm,)

    f32 = jnp.float32
    x_p = jnp.zeros((s_pad, dp), f32).at[:S, :D].set(arrays.astype(f32))
    w1t = jnp.zeros((dp, dp), f32).at[:D, :D].set(params["w1"].T.astype(f32))
    b1 = jnp.zeros((1, dp), f32).at[0, :D].set(params["b1"].astype(f32))
    g = jnp.zeros((1, dp), f32).at[0, :D].set(params["gamma"].astype(f32))
    bt = jnp.zeros((1, dp), f32).at[0, :D].set(params["beta"].astype(f32))
    w2 = jnp.zeros((1, s_pad), f32).at[0, :S].set(params["w2"].reshape(-1).astype(f32))
    wo = jnp.zeros((1, dp), f32).at[0, :D].set(params["wo"].reshape(-1).astype(f32))
    scal = jnp.stack([params["b2"].reshape(()), params["bo"].reshape(())]).astype(f32)

    return pl.pallas_call(
        functools.partial(_mlp_kernel, d_real=float(D)),
        out_shape=jax.ShapeDtypeStruct((1, 1), f32),
        grid=grid,
        in_specs=[
            pl.BlockSpec((tm, dp), lambda i: (i, 0)),            # x row tile (pipelined)
            pl.BlockSpec((dp, dp), lambda i: (0, 0)),            # W1^T (grid-invariant)
            pl.BlockSpec((1, dp), lambda i: (0, 0)),             # b1
            pl.BlockSpec((1, dp), lambda i: (0, 0)),             # gamma
            pl.BlockSpec((1, dp), lambda i: (0, 0)),             # beta
            pl.BlockSpec((1, tm), lambda i: (0, i)),             # fc2 weight slice
            pl.BlockSpec((1, dp), lambda i: (0, 0)),             # output weight
            pl.BlockSpec(memory_space=pltpu.MemorySpace.SMEM),   # [b2, bo] scalars
        ],
        out_specs=pl.BlockSpec((1, 1), lambda i: (0, 0)),
        scratch_shapes=[pltpu.VMEM((1, dp), jnp.float32)],
        compiler_params=pltpu.CompilerParams(
            # The single grid axis is a reduction into the accumulator scratch.
            dimension_semantics=("arbitrary",),
            vmem_limit_bytes=32 * 1024 * 1024,
        ),
    )(x_p, w1t, b1, g, bt, w2, wo, scal)


# ----------------------------------------------------------------------------
# Pure-JAX reference (identical math, no Pallas) for verification
# ----------------------------------------------------------------------------
def reference_forward(arrays, params):
    x = arrays.astype(jnp.float32)
    h1 = jnp.maximum(x @ params["w1"].T + params["b1"], 0.0)
    mu = jnp.mean(h1, axis=-1, keepdims=True)
    var = jnp.mean(jnp.square(h1 - mu), axis=-1, keepdims=True)
    h1 = (h1 - mu) * jax.lax.rsqrt(var + LN_EPS) * params["gamma"] + params["beta"]
    h2 = jnp.maximum(h1.T @ params["w2"].T + params["b2"], 0.0)   # (D, 1)
    return h2.T @ params["wo"].T + params["bo"]                   # (1, 1)


# ----------------------------------------------------------------------------
# Deterministic parameter init (PyTorch Linear / LayerNorm defaults)
# ----------------------------------------------------------------------------
def init_params(key, input_dim, stacked_dim):
    k1, k2, k3, k4, k5, k6 = jax.random.split(key, 6)
    lim1 = 1.0 / np.sqrt(input_dim)
    lim2 = 1.0 / np.sqrt(stacked_dim)
    return dict(
        w1=jax.random.uniform(k1, (input_dim, input_dim), jnp.float32, -lim1, lim1),
        b1=jax.random.uniform(k2, (input_dim,), jnp.float32, -lim1, lim1),
        gamma=jnp.ones((input_dim,), jnp.float32),
        beta=jnp.zeros((input_dim,), jnp.float32),
        w2=jax.random.uniform(k3, (1, stacked_dim), jnp.float32, -lim2, lim2),
        b2=jax.random.uniform(k4, (1,), jnp.float32, -lim2, lim2),
        wo=jax.random.uniform(k5, (1, input_dim), jnp.float32, -lim1, lim1),
        bo=jax.random.uniform(k6, (1,), jnp.float32, -lim1, lim1),
    )


# ----------------------------------------------------------------------------
if __name__ == "__main__":
    key = jax.random.PRNGKey(0)

    # (stacked_dim, input_dim): a small case and one that exercises row tiling
    # (grid > 1) plus lane/row padding.
    cases = [(8, 32), (300, 96)]
    for stacked_dim, input_dim in cases:
        kx, kp, key = jax.random.split(key, 3)
        arrays = jax.random.normal(kx, (stacked_dim, input_dim), jnp.float32)
        params = init_params(kp, input_dim, stacked_dim)

        out = mlp2hidden_relu_forward(arrays, params)
        out = jax.block_until_ready(out)
        assert out.shape == (1, 1)

        ref = reference_forward(arrays, params)
        np.testing.assert_allclose(np.asarray(out), np.asarray(ref),
                                   rtol=1e-3, atol=1e-4)

    print("KERNEL_OK")
</pallas_src>

<mosaic_0001>
module attributes {stable_mosaic.version = 11 : i64} {
  func.func @_mlp_kernel(%arg0: i32, %arg1: memref<8x128xf32, #tpu.memory_space<vmem>>, %arg2: memref<128x128xf32, #tpu.memory_space<vmem>>, %arg3: memref<1x128xf32, #tpu.memory_space<vmem>>, %arg4: memref<1x128xf32, #tpu.memory_space<vmem>>, %arg5: memref<1x128xf32, #tpu.memory_space<vmem>>, %arg6: memref<1x8xf32, #tpu.memory_space<vmem>>, %arg7: memref<1x128xf32, #tpu.memory_space<vmem>>, %arg8: memref<2xf32, #tpu.memory_space<smem>>, %arg9: memref<1x1xf32, #tpu.memory_space<vmem>>, %arg10: memref<1x128xf32, #tpu.memory_space<vmem>>) attributes {dimension_semantics = [#tpu.dimension_semantics<arbitrary>], iteration_bounds = array<i64: 1>, scalar_prefetch = 0 : i64, scratch_operands = 1 : i64, tpu.core_type = #tpu.core_type<tc>, window_params = [{transform_indices = @transform_0, window_bounds = array<i64: 8, 128>}, {pipeline_mode = #tpu.pipeline_mode<synchronous>, transform_indices = @transform_1, window_bounds = array<i64: 128, 128>}, {pipeline_mode = #tpu.pipeline_mode<synchronous>, transform_indices = @transform_2, window_bounds = array<i64: 1, 128>}, {pipeline_mode = #tpu.pipeline_mode<synchronous>, transform_indices = @transform_3, window_bounds = array<i64: 1, 128>}, {pipeline_mode = #tpu.pipeline_mode<synchronous>, transform_indices = @transform_4, window_bounds = array<i64: 1, 128>}, {transform_indices = @transform_5, window_bounds = array<i64: 1, 8>}, {pipeline_mode = #tpu.pipeline_mode<synchronous>, transform_indices = @transform_6, window_bounds = array<i64: 1, 128>}, {transform_indices = @transform_7, window_bounds = array<i64: 2>}, {pipeline_mode = #tpu.pipeline_mode<synchronous>, transform_indices = @transform_8, window_bounds = array<i64: 1, 1>}]} {
    %c0_i32 = arith.constant 0 : i32
    %0 = arith.cmpi eq, %arg0, %c0_i32 : i32
    %1 = arith.extui %0 : i1 to i32
    %c0_i32_0 = arith.constant 0 : i32
    %2 = arith.cmpi ne, %1, %c0_i32_0 : i32
    scf.if %2 {
      %cst_26 = arith.constant 0.000000e+00 : f32
      %45 = vector.broadcast %cst_26 : f32 to vector<1x128xf32>
      %c0_27 = arith.constant 0 : index
      %c0_28 = arith.constant 0 : index
      %46 = vector.load %arg10[%c0_27, %c0_28] : memref<1x128xf32, #tpu.memory_space<vmem>>, vector<1x128xf32>
      tpu.vector_store %arg10[%c0_27, %c0_28], %45 {strides = array<i32>} : memref<1x128xf32, #tpu.memory_space<vmem>>, vector<1x128xf32>,
    } else {
    }
    %c0 = arith.constant 0 : index
    %c0_1 = arith.constant 0 : index
    %3 = vector.load %arg1[%c0, %c0_1] : memref<8x128xf32, #tpu.memory_space<vmem>>, vector<8x128xf32>
    %c0_2 = arith.constant 0 : index
    %c0_3 = arith.constant 0 : index
    %4 = vector.load %arg2[%c0_2, %c0_3] : memref<128x128xf32, #tpu.memory_space<vmem>>, vector<128x128xf32>
    %cst = arith.constant dense<0.000000e+00> : vector<8x128xf32>
    %5 = tpu.matmul %3, %4, %cst {dimension_numbers = #tpu.dot_dimension_numbers<[1], [0], [0], [1], [0, 0, 1, 1], [], []>} : vector<8x128xf32>, vector<128x128xf32>, vector<8x128xf32> -> vector<8x128xf32>
    %c0_4 = arith.constant 0 : index
    %c0_5 = arith.constant 0 : index
    %6 = vector.load %arg3[%c0_4, %c0_5] : memref<1x128xf32, #tpu.memory_space<vmem>>, vector<1x128xf32>
    %7 = vector.broadcast %6 : vector<1x128xf32> to vector<8x128xf32>
    %8 = arith.addf %5, %7 : vector<8x128xf32>
    %cst_6 = arith.constant 0.000000e+00 : f32
    %9 = vector.broadcast %cst_6 : f32 to vector<8x128xf32>
    %10 = arith.maximumf %8, %9 : vector<8x128xf32>
    %cst_7 = arith.constant dense<0.000000e+00> : vector<8xf32>
    %11 = vector.multi_reduction <add>, %10, %cst_7 [1] : vector<8x128xf32> to vector<8xf32>
    %12 = vector.shape_cast %11 : vector<8xf32> to vector<8x1xf32>
    %cst_8 = arith.constant 3.125000e-02 : f32
    %13 = vector.broadcast %cst_8 : f32 to vector<8x1xf32>
    %14 = arith.mulf %12, %13 : vector<8x1xf32>
    %15 = arith.mulf %10, %10 : vector<8x128xf32>
    %cst_9 = arith.constant dense<0.000000e+00> : vector<8xf32>
    %16 = vector.multi_reduction <add>, %15, %cst_9 [1] : vector<8x128xf32> to vector<8xf32>
    %17 = vector.shape_cast %16 : vector<8xf32> to vector<8x1xf32>
    %cst_10 = arith.constant 3.125000e-02 : f32
    %18 = vector.broadcast %cst_10 : f32 to vector<8x1xf32>
    %19 = arith.mulf %17, %18 : vector<8x1xf32>
    %20 = arith.mulf %14, %14 : vector<8x1xf32>
    %21 = arith.subf %19, %20 : vector<8x1xf32>
    %cst_11 = arith.constant 0.000000e+00 : f32
    %22 = vector.broadcast %cst_11 : f32 to vector<8x1xf32>
    %23 = arith.maximumf %21, %22 : vector<8x1xf32>
    %24 = vector.broadcast %14 : vector<8x1xf32> to vector<8x128xf32>
    %25 = arith.subf %10, %24 : vector<8x128xf32>
    %cst_12 = arith.constant 9.99999974E-6 : f32
    %26 = vector.broadcast %cst_12 : f32 to vector<8x1xf32>
    %27 = arith.addf %23, %26 : vector<8x1xf32>
    %28 = math.rsqrt %27 : vector<8x1xf32>
    %29 = vector.broadcast %28 : vector<8x1xf32> to vector<8x128xf32>
    %30 = arith.mulf %25, %29 : vector<8x128xf32>
    %c0_13 = arith.constant 0 : index
    %c0_14 = arith.constant 0 : index
    %31 = vector.load %arg4[%c0_13, %c0_14] : memref<1x128xf32, #tpu.memory_space<vmem>>, vector<1x128xf32>
    %32 = vector.broadcast %31 : vector<1x128xf32> to vector<8x128xf32>
    %33 = arith.mulf %30, %32 : vector<8x128xf32>
    %c0_15 = arith.constant 0 : index
    %c0_16 = arith.constant 0 : index
    %34 = vector.load %arg5[%c0_15, %c0_16] : memref<1x128xf32, #tpu.memory_space<vmem>>, vector<1x128xf32>
    %35 = vector.broadcast %34 : vector<1x128xf32> to vector<8x128xf32>
    %36 = arith.addf %33, %35 : vector<8x128xf32>
    %c0_17 = arith.constant 0 : index
    %c0_18 = arith.constant 0 : index
    %37 = vector.load %arg10[%c0_17, %c0_18] : memref<1x128xf32, #tpu.memory_space<vmem>>, vector<1x128xf32>
    %c0_19 = arith.constant 0 : index
    %c0_20 = arith.constant 0 : index
    %38 = vector.load %arg6[%c0_19, %c0_20] : memref<1x8xf32, #tpu.memory_space<vmem>>, vector<1x8xf32>
    %cst_21 = arith.constant dense<0.000000e+00> : vector<1x128xf32>
    %39 = tpu.matmul %38, %36, %cst_21 {dimension_numbers = #tpu.dot_dimension_numbers<[1], [0], [0], [1], [0, 0, 1, 1], [], []>} : vector<1x8xf32>, vector<8x128xf32>, vector<1x128xf32> -> vector<1x128xf32>
    %40 = arith.addf %37, %39 : vector<1x128xf32>
    %c0_22 = arith.constant 0 : index
    %c0_23 = arith.constant 0 : index
    %41 = vector.load %arg10[%c0_22, %c0_23] : memref<1x128xf32, #tpu.memory_space<vmem>>, vector<1x128xf32>
    tpu.vector_store %arg10[%c0_22, %c0_23], %40 {strides = array<i32>} : memref<1x128xf32, #tpu.memory_space<vmem>>, vector<1x128xf32>,
    %c0_i32_24 = arith.constant 0 : i32
    %42 = arith.cmpi eq, %arg0, %c0_i32_24 : i32
    %43 = arith.extui %42 : i1 to i32
    %c0_i32_25 = arith.constant 0 : i32
    %44 = arith.cmpi ne, %43, %c0_i32_25 : i32
    scf.if %44 {
      %c0_26 = arith.constant 0 : index
      %45 = memref.load %arg8[%c0_26] : memref<2xf32, #tpu.memory_space<smem>>
      %c1 = arith.constant 1 : index
      %46 = memref.load %arg8[%c1] : memref<2xf32, #tpu.memory_space<smem>>
      %c0_27 = arith.constant 0 : index
      %c0_28 = arith.constant 0 : index
      %47 = vector.load %arg10[%c0_27, %c0_28] : memref<1x128xf32, #tpu.memory_space<vmem>>, vector<1x128xf32>
      %48 = vector.broadcast %45 : f32 to vector<1x128xf32>
      %49 = arith.addf %47, %48 : vector<1x128xf32>
      %cst_29 = arith.constant 0.000000e+00 : f32
      %50 = vector.broadcast %cst_29 : f32 to vector<1x128xf32>
      %51 = arith.maximumf %49, %50 : vector<1x128xf32>
      %c0_30 = arith.constant 0 : index
      %c0_31 = arith.constant 0 : index
      %52 = vector.load %arg7[%c0_30, %c0_31] : memref<1x128xf32, #tpu.memory_space<vmem>>, vector<1x128xf32>
      %53 = arith.mulf %51, %52 : vector<1x128xf32>
      %cst_32 = arith.constant dense<0.000000e+00> : vector<1xf32>
      %54 = vector.multi_reduction <add>, %53, %cst_32 [1] : vector<1x128xf32> to vector<1xf32>
      %55 = vector.shape_cast %54 : vector<1xf32> to vector<1x1xf32>
      %56 = vector.broadcast %46 : f32 to vector<1x1xf32>
      %57 = arith.addf %55, %56 : vector<1x1xf32>
      %c0_33 = arith.constant 0 : index
      %c0_34 = arith.constant 0 : index
      %58 = vector.load %arg9[%c0_33, %c0_34] : memref<1x1xf32, #tpu.memory_space<vmem>>, vector<1x1xf32>
      tpu.vector_store %arg9[%c0_33, %c0_34], %57 {strides = array<i32>} : memref<1x1xf32, #tpu.memory_space<vmem>>, vector<1x1xf32>,
    } else {
    }
    return
  }
  func.func @transform_0(%arg0: i32) -> (i32, i32) {
    %c0_i32 = arith.constant 0 : i32
    %c0_i32_0 = arith.constant 0 : i32
    return %arg0, %c0_i32 : i32, i32
  }
  func.func @transform_1(%arg0: i32) -> (i32, i32) {
    %c0_i32 = arith.constant 0 : i32
    %c0_i32_0 = arith.constant 0 : i32
    %c0_i32_1 = arith.constant 0 : i32
    return %c0_i32, %c0_i32_0 : i32, i32
  }
  func.func @transform_2(%arg0: i32) -> (i32, i32) {
    %c0_i32 = arith.constant 0 : i32
    %c0_i32_0 = arith.constant 0 : i32
    %c0_i32_1 = arith.constant 0 : i32
    return %c0_i32, %c0_i32_0 : i32, i32
  }
  func.func @transform_3(%arg0: i32) -> (i32, i32) {
    %c0_i32 = arith.constant 0 : i32
    %c0_i32_0 = arith.constant 0 : i32
    %c0_i32_1 = arith.constant 0 : i32
    return %c0_i32, %c0_i32_0 : i32, i32
  }
  func.func @transform_4(%arg0: i32) -> (i32, i32) {
    %c0_i32 = arith.constant 0 : i32
    %c0_i32_0 = arith.constant 0 : i32
    %c0_i32_1 = arith.constant 0 : i32
    return %c0_i32, %c0_i32_0 : i32, i32
  }
  func.func @transform_5(%arg0: i32) -> (i32, i32) {
    %c0_i32 = arith.constant 0 : i32
    %c0_i32_0 = arith.constant 0 : i32
    return %c0_i32, %arg0 : i32, i32
  }
  func.func @transform_6(%arg0: i32) -> (i32, i32) {
    %c0_i32 = arith.constant 0 : i32
    %c0_i32_0 = arith.constant 0 : i32
    %c0_i32_1 = arith.constant 0 : i32
    return %c0_i32, %c0_i32_0 : i32, i32
  }
  func.func @transform_7(%arg0: i32) -> i32 {
    %c0_i32 = arith.constant 0 : i32
    %c0_i32_0 = arith.constant 0 : i32
    return %c0_i32 : i32
  }
  func.func @transform_8(%arg0: i32) -> (i32, i32) {
    %c0_i32 = arith.constant 0 : i32
    %c0_i32_0 = arith.constant 0 : i32
    %c0_i32_1 = arith.constant 0 : i32
    return %c0_i32, %c0_i32_0 : i32, i32
  }
}

</mosaic_0001>

<llo_original>
// kernel: tpu_custom_call.1
$region0: #{tpu_custom_call.1}
  #allocation0 [shape = 'u32[]', space=smem, size = 0x4, offset = 0x4, fixed_abs, tag = 'smem constant byte address 0x4 - core index']
  #allocation1 [shape = 'u32[144,128]{1,0:T(1,128)}', space=vmem, size = 0x12000, scoped, tag = 'internal scratch']
  #allocation2 [shape = 'f32[1,128]{1,0:T(1,128)}', space=vmem, size = 0x200, scoped, tag = 'scratch operand']
  %s0 = inlined_call_operand.hbm [shape: f32[8,128], index: 0, kind: input, shape index: {}]
  %s1 = inlined_call_operand.hbm [shape: f32[128,128], index: 1, kind: input, shape index: {}]
  %s2 = inlined_call_operand.vmem [shape: f32[1,128], index: 2, kind: input, shape index: {}]
  %s3 = inlined_call_operand.vmem [shape: f32[1,128], index: 3, kind: input, shape index: {}]
  %s4 = inlined_call_operand.vmem [shape: f32[1,128], index: 4, kind: input, shape index: {}]
  %s5 = inlined_call_operand.vmem [shape: f32[1,8], index: 5, kind: input, shape index: {}]
  %s6 = inlined_call_operand.vmem [shape: f32[1,128], index: 6, kind: input, shape index: {}]
  %s7 = inlined_call_operand.vmem [shape: f32[2], index: 7, kind: input, shape index: {}]
  %s8 = inlined_call_operand.hbm [shape: f32[1,1], index: 8, kind: output, shape index: {}]
  %s9 = sld [smem:[#allocation0]]
  $region62: #{tpu_custom_call.1} parent=0
    _
  %s11 = ssub.s32 1, %s9
  %s12 = scalar_select 0, %s11, %s9
  $region1: #{tpu_custom_call.1} parent=0
    #allocation3 [shape = 'u8[4096]{0}', space=vmem, size = 0x1000, scoped, tag = 'input window, operand 0, single buffered']
    #allocation4 [shape = 's32[1]{0}', space=sflag, size = 0x4, scoped, tag = 'scoped memory for tpu_custom_call.1']
    #allocation5 [shape = 's32[1]{0}', space=sflag, size = 0x4, scoped, tag = 'scoped memory for tpu_custom_call.1']
    #allocation6 [shape = 's32[1]{0}', space=sflag, size = 0x4, scoped, tag = 'scoped memory for tpu_custom_call.1']
    #allocation7 [shape = 'u8[65536]{0}', space=vmem, size = 0x10000, scoped, tag = 'input window, operand 1, single buffered']
    #allocation8 [shape = 's32[1]{0}', space=sflag, size = 0x4, scoped, tag = 'scoped memory for tpu_custom_call.1']
    #allocation9 [shape = 'u8[512]{0}', space=smem, size = 0x200, scoped, tag = 'input window, operand 7, single buffered']
    #allocation10 [shape = 'u8[512]{0}', space=vmem, size = 0x400, scoped, tag = 'output window, operand 0, single buffered']
    %13 = vsyncpa [#allocation4], 0
    %14 = vsyncpa [#allocation8], 0
    %15 = vsyncpa [#allocation6], 0
    %16 = vsyncpa [#allocation5], 0
    // Predicated region
    $region2: #{tpu_custom_call.1} parent=1 // pred_check
      _
    $region3: #{tpu_custom_call.1} parent=1 // pred_check_branch
      %18 = sbr.rel (0) target = $region5
    $region4: #{tpu_custom_call.1} parent=1 // pred_region
      %s20 = ssub.s32 128, 128
      %21 = vsyncadd [#allocation4], %s20
      %s23 = sshll.u32 [#allocation3], 4
      %s24 = int_to_ptr.vmem [resolvable:$true] %s23
      %26 = dma.hbm_to_vmem [thread:$0]  %s0, 128, %s24, [#allocation4]
    $region5: #{tpu_custom_call.1} parent=1 // pred_fallthru
      _
    // Predicated region
    $region6: #{tpu_custom_call.1} parent=1 // pred_check
      _
    $region7: #{tpu_custom_call.1} parent=1 // pred_check_branch
      %28 = sbr.rel (0) target = $region9
    $region8: #{tpu_custom_call.1} parent=1 // pred_region
      %s30 = ssub.s32 2048, 2048
      %31 = vsyncadd [#allocation8], %s30
      %s32 = sshll.u32 [#allocation7], 4
      %s33 = int_to_ptr.vmem [resolvable:$true] %s32
      %38 = dma.hbm_to_vmem [thread:$0]  %s1, 2048, %s33, [#allocation8], 128, 128, 8
    $region9: #{tpu_custom_call.1} parent=1 // pred_fallthru
      _
    // Predicated region
    $region10: #{tpu_custom_call.1} parent=1 // pred_check
      _
    $region11: #{tpu_custom_call.1} parent=1 // pred_check_branch
      %40 = sbr.rel (0) target = $region13
    $region12: #{tpu_custom_call.1} parent=1 // pred_region
      _
    $region13: #{tpu_custom_call.1} parent=1 // pred_fallthru
      _
    // Predicated region
    $region14: #{tpu_custom_call.1} parent=1 // pred_check
      _
    $region15: #{tpu_custom_call.1} parent=1 // pred_check_branch
      %42 = sbr.rel (0) target = $region17
    $region16: #{tpu_custom_call.1} parent=1 // pred_region
      _
    $region17: #{tpu_custom_call.1} parent=1 // pred_fallthru
      _
    // Predicated region
    $region18: #{tpu_custom_call.1} parent=1 // pred_check
      _
    $region19: #{tpu_custom_call.1} parent=1 // pred_check_branch
      %44 = sbr.rel (0) target = $region21
    $region20: #{tpu_custom_call.1} parent=1 // pred_region
      _
    $region21: #{tpu_custom_call.1} parent=1 // pred_fallthru
      _
    // Predicated region
    $region22: #{tpu_custom_call.1} parent=1 // pred_check
      _
    $region23: #{tpu_custom_call.1} parent=1 // pred_check_branch
      %46 = sbr.rel (0) target = $region25
    $region24: #{tpu_custom_call.1} parent=1 // pred_region
      _
    $region25: #{tpu_custom_call.1} parent=1 // pred_fallthru
      _
    // Predicated region
    $region26: #{tpu_custom_call.1} parent=1 // pred_check
      _
    $region27: #{tpu_custom_call.1} parent=1 // pred_check_branch
      %48 = sbr.rel (0) target = $region29
    $region28: #{tpu_custom_call.1} parent=1 // pred_region
      _
    $region29: #{tpu_custom_call.1} parent=1 // pred_fallthru
      _
    // Predicated region
    $region30: #{tpu_custom_call.1} parent=1 // pred_check
      _
    $region31: #{tpu_custom_call.1} parent=1 // pred_check_branch
      %50 = sbr.rel (0) target = $region33
    $region32: #{tpu_custom_call.1} parent=1 // pred_region
      %s52 = ssub.s32 16, 16
      %53 = vsyncadd [#allocation6], %s52
      %s55 = sshll.u32 %s7, 4
      %s56 = int_to_ptr.vmem [resolvable:$true] %s55
      %58 = dma.vmem_to_smem %s56, 16, [#allocation9], [#allocation6]
    $region33: #{tpu_custom_call.1} parent=1 // pred_fallthru
      _
    // Predicated region
    $region34: #{tpu_custom_call.1} parent=1 // pred_check
      _
    $region35: #{tpu_custom_call.1} parent=1 // pred_check_branch
      %60 = sbr.rel (0) target = $region37
    $region36: #{tpu_custom_call.1} parent=1 // pred_region
      %61 = dma.done [#allocation4], 128
    $region37: #{tpu_custom_call.1} parent=1 // pred_fallthru
      _
    // Predicated region
    $region38: #{tpu_custom_call.1} parent=1 // pred_check
      _
    $region39: #{tpu_custom_call.1} parent=1 // pred_check_branch
      %63 = sbr.rel (0) target = $region41
    $region40: #{tpu_custom_call.1} parent=1 // pred_region
      %64 = dma.done [#allocation8], 2048
    $region41: #{tpu_custom_call.1} parent=1 // pred_fallthru
      _
    // Predicated region
    $region42: #{tpu_custom_call.1} parent=1 // pred_check
      _
    $region43: #{tpu_custom_call.1} parent=1 // pred_check_branch
      %66 = sbr.rel (0) target = $region45
    $region44: #{tpu_custom_call.1} parent=1 // pred_region
      %67 = dma.done [#allocation6], 16
    $region45: #{tpu_custom_call.1} parent=1 // pred_fallthru
      _
    %68 = sfence
    %p69 = scmp.eq.s32.totalorder 0, 0
    // Predicated region
    $region46: #{tpu_custom_call.1} parent=1 // pred_check
      %p70 = pneg %p69
    $region47: #{tpu_custom_call.1} parent=1 // pred_check_branch
      %72 = sbr.rel (%p70) target = $region49
    $region48: #{tpu_custom_call.1} parent=1 // pred_region
      %73 = vst [vmem:[#allocation2] sm:$0x1] 0.0
    $region49: #{tpu_custom_call.1} parent=1 // pred_fallthru
      _
    %v74 = vld [vmem:[#allocation3] sm:$0xff]
    %v75 = vld [vmem:[#allocation7] sm:$0xff]
    %v76 = vld [vmem:[#allocation7 + $0x8] sm:$0xff]
    %v77 = vld [vmem:[#allocation7 + $0x10] sm:$0xff]
    %v78 = vld [vmem:[#allocation7 + $0x18] sm:$0xff]
    %v79 = vld [vmem:[#allocation7 + $0x20] sm:$0xff]
    %v80 = vld [vmem:[#allocation7 + $0x28] sm:$0xff]
    %v81 = vld [vmem:[#allocation7 + $0x30] sm:$0xff]
    %v82 = vld [vmem:[#allocation7 + $0x38] sm:$0xff]
    %v83 = vld [vmem:[#allocation7 + $0x40] sm:$0xff]
    %v84 = vld [vmem:[#allocation7 + $0x48] sm:$0xff]
    %v85 = vld [vmem:[#allocation7 + $0x50] sm:$0xff]
    %v86 = vld [vmem:[#allocation7 + $0x58] sm:$0xff]
    %v87 = vld [vmem:[#allocation7 + $0x60] sm:$0xff]
    %v88 = vld [vmem:[#allocation7 + $0x68] sm:$0xff]
    %v89 = vld [vmem:[#allocation7 + $0x70] sm:$0xff]
    %v90 = vld [vmem:[#allocation7 + $0x78] sm:$0xff]
    %v91 = vld [vmem:[%s2] sm:$0x1]
    %v93 = vlaneseq
    %v94 = vshrl.u32 %v93, 7
    %v95 = vsub.s32 0, %v94
    %v96 = vrot.slane %v91, %v95
    %98 = vmatprep.subr.mxu0 0.0
    %99 = vmatpush1.msra.mxu0 %v75
    %100 = vmatprep.subr.mxu0 0.0
    %101 = vmatpush1.msra.mxu0 %v76
    %102 = vmatprep.subr.mxu0 0.0
    %103 = vmatpush1.msra.mxu0 %v77
    %104 = vmatprep.subr.mxu0 0.0
    %105 = vmatpush1.msra.mxu0 %v78
    %106 = vmatprep.subr.mxu0 0.0
    %107 = vmatpush1.msra.mxu0 %v79
    %108 = vmatprep.subr.mxu0 0.0
    %109 = vmatpush1.msra.mxu0 %v80
    %110 = vmatprep.subr.mxu0 0.0
    %111 = vmatpush1.msra.mxu0 %v81
    %112 = vmatprep.subr.mxu0 0.0
    %113 = vmatpush1.msra.mxu0 %v82
    %114 = vmatprep.subr.mxu0 0.0
    %115 = vmatpush1.msra.mxu0 %v83
    %116 = vmatprep.subr.mxu0 0.0
    %117 = vmatpush1.msra.mxu0 %v84
    %118 = vmatprep.subr.mxu0 0.0
    %119 = vmatpush1.msra.mxu0 %v85
    %120 = vmatprep.subr.mxu0 0.0
    %121 = vmatpush1.msra.mxu0 %v86
    %122 = vmatprep.subr.mxu0 0.0
    %123 = vmatpush1.msra.mxu0 %v87
    %124 = vmatprep.subr.mxu0 0.0
    %125 = vmatpush1.msra.mxu0 %v88
    %126 = vmatprep.subr.mxu0 0.0
    %127 = vmatpush1.msra.mxu0 %v89
    %128 = vmatprep.subr.mxu0 0.0
    %129 = vmatpush1.msra.mxu0 %v90
    %130 = vmatprep.subr.mxu0 0.0
    %131 = vmatpush1.msra.mxu0 0.0
    %132 = vmatprep.subr.mxu0 0.0
    %133 = vmatpush1.msra.mxu0 0.0
    %134 = vmatprep.subr.mxu0 0.0
    %135 = vmatpush1.msra.mxu0 0.0
    %136 = vmatprep.subr.mxu0 0.0
    %137 = vmatpush1.msra.mxu0 0.0
    %138 = vmatprep.subr.mxu0 0.0
    %139 = vmatpush1.msra.mxu0 0.0
    %140 = vmatprep.subr.mxu0 0.0
    %141 = vmatpush1.msra.mxu0 0.0
    %142 = vmatprep.subr.mxu0 0.0
    %143 = vmatpush1.msra.mxu0 0.0
    %144 = vmatprep.subr.mxu0 0.0
    %145 = vmatpush1.msra.mxu0 0.0
    %146 = vmatprep.subr.mxu0 0.0
    %147 = vmatpush1.msra.mxu0 0.0
    %148 = vmatprep.subr.mxu0 0.0
    %149 = vmatpush1.msra.mxu0 0.0
    %150 = vmatprep.subr.mxu0 0.0
    %151 = vmatpush1.msra.mxu0 0.0
    %152 = vmatprep.subr.mxu0 0.0
    %153 = vmatpush1.msra.mxu0 0.0
    %154 = vmatprep.subr.mxu0 0.0
    %155 = vmatpush1.msra.mxu0 0.0
    %156 = vmatprep.subr.mxu0 0.0
    %157 = vmatpush1.msra.mxu0 0.0
    %158 = vmatprep.subr.mxu0 0.0
    %159 = vmatpush1.msra.mxu0 0.0
    %160 = vmatprep.subr.mxu0 0.0
    %161 = vmatpush1.msra.mxu0 0.0
    %162 = vmatprep.mubr.f32.mxu0 0.0
    %163 = vmatmul.mubr.f32.gmra.mrb[0].mxu0 %v74
    %v164 = vpop.f32.mrb[0].mxu0
    %v165 = vadd.f32 %v96, %v164
    %v166 = vpop.f32.mrb[0].mxu0
    %167 = vdwg.mxu0
    %v168 = vmax.f32 %v165, 0.0
    %169 = vadd.xlane.f32.xlu0 %v168
    %v170 = vpop.xlane.xlu0 %169
    %v171 = vmul.f32 %v170, 0.03125
    %v172 = vmul.f32 %v168, %v168
    %173 = vadd.xlane.f32.xlu0 %v172
    %v174 = vpop.xlane.xlu0 %173
    %v175 = vmul.f32 %v174, 0.03125
    %v176 = vmul.f32 %v171, %v171
    %v177 = vsub.f32 %v175, %v176
    %v178 = vmax.f32 %v177, 0.0
    %v179 = vsub.f32 %v168, %v171
    %v180 = vadd.f32 %v178, 1e-05
    %v181 = vrsqrt.pop %v180
    %v182 = vmul.f32 %v179, %v181
    %v183 = vld [vmem:[%s3] sm:$0x1]
    %v185 = vlaneseq
    %v186 = vshrl.u32 %v185, 7
    %v187 = vsub.s32 0, %v186
    %v188 = vrot.slane %v183, %v187
    %v190 = vmul.f32 %v182, %v188
    %v191 = vld [vmem:[%s4] sm:$0x1]
    %v193 = vlaneseq
    %v194 = vshrl.u32 %v193, 7
    %v195 = vsub.s32 0, %v194
    %v196 = vrot.slane %v191, %v195
    %v198 = vadd.f32 %v190, %v196
    %v199 = vld [vmem:[#allocation2] sm:$0x1]
    %v200 = vld [vmem:[%s5] sm:$0x1]
    %vm201 = vcmask 64512
    %v203 = vsel %vm201, %v200, 0
    %205 = vmatprep.subr.mxu0 0.0
    %206 = vmatpush1.msra.mxu0 %v198
    %207 = vmatprep.subr.mxu0 0.0
    %208 = vmatpush1.msra.mxu0 0.0
    %209 = vmatprep.subr.mxu0 0.0
    %210 = vmatpush1.msra.mxu0 0.0
    %211 = vmatprep.subr.mxu0 0.0
    %212 = vmatpush1.msra.mxu0 0.0
    %213 = vmatprep.subr.mxu0 0.0
    %214 = vmatpush1.msra.mxu0 0.0
    %215 = vmatprep.subr.mxu0 0.0
    %216 = vmatpush1.msra.mxu0 0.0
    %217 = vmatprep.subr.mxu0 0.0
    %218 = vmatpush1.msra.mxu0 0.0
    %219 = vmatprep.subr.mxu0 0.0
    %220 = vmatpush1.msra.mxu0 0.0
    %221 = vmatprep.subr.mxu0 0.0
    %222 = vmatpush1.msra.mxu0 0.0
    %223 = vmatprep.subr.mxu0 0.0
    %224 = vmatpush1.msra.mxu0 0.0
    %225 = vmatprep.subr.mxu0 0.0
    %226 = vmatpush1.msra.mxu0 0.0
    %227 = vmatprep.subr.mxu0 0.0
    %228 = vmatpush1.msra.mxu0 0.0
    %229 = vmatprep.subr.mxu0 0.0
    %230 = vmatpush1.msra.mxu0 0.0
    %231 = vmatprep.subr.mxu0 0.0
    %232 = vmatpush1.msra.mxu0 0.0
    %233 = vmatprep.subr.mxu0 0.0
    %234 = vmatpush1.msra.mxu0 0.0
    %235 = vmatprep.subr.mxu0 0.0
    %236 = vmatpush1.msra.mxu0 0.0
    %237 = vmatprep.subr.mxu0 0.0
    %238 = vmatpush1.msra.mxu0 0.0
    %239 = vmatprep.subr.mxu0 0.0
    %240 = vmatpush1.msra.mxu0 0.0
    %241 = vmatprep.subr.mxu0 0.0
    %242 = vmatpush1.msra.mxu0 0.0
    %243 = vmatprep.subr.mxu0 0.0
    %244 = vmatpush1.msra.mxu0 0.0
    %245 = vmatprep.subr.mxu0 0.0
    %246 = vmatpush1.msra.mxu0 0.0
    %247 = vmatprep.subr.mxu0 0.0
    %248 = vmatpush1.msra.mxu0 0.0
    %249 = vmatprep.subr.mxu0 0.0
    %250 = vmatpush1.msra.mxu0 0.0
    %251 = vmatprep.subr.mxu0 0.0
    %252 = vmatpush1.msra.mxu0 0.0
    %253 = vmatprep.subr.mxu0 0.0
    %254 = vmatpush1.msra.mxu0 0.0
    %255 = vmatprep.subr.mxu0 0.0
    %256 = vmatpush1.msra.mxu0 0.0
    %257 = vmatprep.subr.mxu0 0.0
    %258 = vmatpush1.msra.mxu0 0.0
    %259 = vmatprep.subr.mxu0 0.0
    %260 = vmatpush1.msra.mxu0 0.0
    %261 = vmatprep.subr.mxu0 0.0
    %262 = vmatpush1.msra.mxu0 0.0
    %263 = vmatprep.subr.mxu0 0.0
    %264 = vmatpush1.msra.mxu0 0.0
    %265 = vmatprep.subr.mxu0 0.0
    %266 = vmatpush1.msra.mxu0 0.0
    %267 = vmatprep.subr.mxu0 0.0
    %268 = vmatpush1.msra.mxu0 0.0
    %269 = vmatprep.mubr.f32.mxu0 0.0
    %270 = vmatmul.mubr.f32.gmra.mrb[0].mxu0 %v203
    %v271 = vpop.f32.mrb[0].mxu0
    %v272 = vadd.f32 0.0, %v271
    %v273 = vpop.f32.mrb[0].mxu0
    %274 = vdwg.mxu0
    %v275 = vadd.f32 %v199, %v272
    %276 = vst [vmem:[#allocation2] sm:$0x1] %v275
    // Predicated region
    $region50: #{tpu_custom_call.1} parent=1 // pred_check
      %p277 = pneg %p69
    $region51: #{tpu_custom_call.1} parent=1 // pred_check_branch
      %279 = sbr.rel (%p277) target = $region53
    $region52: #{tpu_custom_call.1} parent=1 // pred_region
      %s280 = sld [smem:[#allocation9]]
      %s281 = sld [smem:[#allocation9 + $0x1]]
      %v282 = vld [vmem:[#allocation2] sm:$0x1]
      %v283 = vstv %s280
      %v284 = vadd.f32 %v282, %v283
      %v285 = vmax.f32 %v284, 0.0
      %v286 = vld [vmem:[%s6] sm:$0x1]
      %v287 = vmul.f32 %v285, %v286
      %vm288 = vcmask 1040384
      %v289 = vsel %vm288, %v287, 0.0
      %290 = vadd.xlane.f32.xlu0 %v289
      %v291 = vpop.xlane.xlu0 %290
      %v292 = vstv %s281
      %v293 = vadd.f32 %v291, %v292
      %vm294 = vcmask 0
      %295 = vst.msk [vmem:[#allocation10] sm:$0x1] %vm294, %v293
    $region53: #{tpu_custom_call.1} parent=1 // pred_fallthru
      _
    // Predicated region
    $region54: #{tpu_custom_call.1} parent=1 // pred_check
      _
    $region55: #{tpu_custom_call.1} parent=1 // pred_check_branch
      %297 = sbr.rel (0) target = $region57
    $region56: #{tpu_custom_call.1} parent=1 // pred_region
      %s299 = ssub.s32 16, 16
      %300 = vsyncadd [#allocation5], %s299
      %s302 = sshll.u32 [#allocation10], 4
      %s303 = int_to_ptr.vmem [resolvable:$true] %s302
      %305 = dma.vmem_to_hbm [thread:$0]  %s303, 16, %s8, [#allocation5]
    $region57: #{tpu_custom_call.1} parent=1 // pred_fallthru
      _
    // Predicated region
    $region58: #{tpu_custom_call.1} parent=1 // pred_check
      _
    $region59: #{tpu_custom_call.1} parent=1 // pred_check_branch
      %307 = sbr.rel (0) target = $region61
    $region60: #{tpu_custom_call.1} parent=1 // pred_region
      %308 = dma.done [#allocation5], 16
    $region61: #{tpu_custom_call.1} parent=1 // pred_fallthru
      _
    %309 = vsyncpa [#allocation4], 1
    %310 = vsyncpa [#allocation8], 1
    %311 = vsyncpa [#allocation5], 1
    %312 = vsyncpa [#allocation6], 1

</llo_original>
